<compile_context>
chip_gen: v7x
topology: tpu7x:2x2x1
jax: 0.10.0
libtpu: 0.0.40
codegen_flags: <defaults>
</compile_context>

<pallas_src>
import jax
import jax.numpy as jnp
from jax import lax
from jax.experimental import pallas as pl
from jax.experimental.pallas import tpu as pltpu


def _round_up(n: int, m: int) -> int:
    return ((n + m - 1) // m) * m


def _center_loss_kernel(x_ref, c_ref, out_ref):
    x = x_ref[...].astype(jnp.float32)   # (TB, Dp) feature rows
    c = c_ref[...].astype(jnp.float32)   # (TB, Dp) gathered (pre-masked) centers

    # F.normalize(v) = v / max(||v||, eps)  ==  v * rsqrt(max(||v||^2, eps^2))
    eps2 = jnp.float32(1e-24)            # (1e-12)^2, still a normal f32

    xc = jnp.sum(x * c, axis=-1, keepdims=True)   # (TB, 1) raw dot
    nx = jnp.sum(x * x, axis=-1, keepdims=True)   # (TB, 1) ||x||^2
    nc = jnp.sum(c * c, axis=-1, keepdims=True)   # (TB, 1) ||c||^2

    sim = xc * lax.rsqrt(jnp.maximum(nx, eps2)) * lax.rsqrt(jnp.maximum(nc, eps2))

    # One lane-dense partial-sum row per batch tile; zero / invalid / padded
    # rows have xc == 0 so they contribute exactly 0 to the partial.
    tile_sum = jnp.sum(sim)
    out_ref[...] = jnp.full((1, 128), tile_sum, dtype=jnp.float32)


def normalized_center_loss(x, centers, labels):
    """x: (B, D) f32, centers: (C, D) f32, labels: (B,) int -> scalar f32 loss."""
    B, D = x.shape
    C, _ = centers.shape

    labels = labels.astype(jnp.int32)
    valid = (labels >= 0) & (labels < C)
    gather_idx = jnp.clip(labels, 0, C - 1)

    # Wrapper-side gather of the labelled center row for each sample; invalid
    # labels get an all-zero row so their cosine similarity is exactly 0.
    gathered = jnp.take(centers, gather_idx, axis=0)                    # (B, D)
    gathered = jnp.where(valid[:, None], gathered, jnp.float32(0.0))    # (B, D)

    # Pad the lane (feature) dim to a multiple of 128 (zeros are free for both
    # norms and dots) and pick a batch tile TB that is a multiple of 8, capped
    # at 512 rows and by a v7x-safe VMEM budget (2 inputs x 2 pipeline bufs).
    Dp = _round_up(D, 128)
    vmem_budget = 40 << 20                               # headroom under v7x 64 MiB
    max_tb_by_vmem = max(8, ((vmem_budget // (16 * Dp)) // 8) * 8)
    TB = min(512, _round_up(B, 8), max_tb_by_vmem)
    Bp = _round_up(B, TB)
    num_tiles = Bp // TB

    x_p = jnp.zeros((Bp, Dp), jnp.float32).at[:B, :D].set(x.astype(jnp.float32))
    c_p = jnp.zeros((Bp, Dp), jnp.float32).at[:B, :D].set(gathered.astype(jnp.float32))

    tile_bytes = TB * Dp * 4
    vmem_limit = int(min(max(2 * 2 * tile_bytes + (2 << 20), 16 << 20), 64 << 20))

    partials = pl.pallas_call(
        _center_loss_kernel,
        out_shape=jax.ShapeDtypeStruct((num_tiles, 128), jnp.float32),
        grid_spec=pltpu.PrefetchScalarGridSpec(
            num_scalar_prefetch=0,
            grid=(num_tiles,),
            in_specs=[
                pl.BlockSpec((TB, Dp), lambda t: (t, 0)),   # feature tile
                pl.BlockSpec((TB, Dp), lambda t: (t, 0)),   # gathered centers tile
            ],
            out_specs=pl.BlockSpec((1, 128), lambda t: (t, 0)),
        ),
        compiler_params=pltpu.CompilerParams(
            dimension_semantics=("parallel",),
            vmem_limit_bytes=vmem_limit),
    )(x_p, c_p)

    # loss = sum_b valid_b * (1 - sim_b) / B = (num_valid - sum_b sim_b) / B
    sim_sum = jnp.sum(partials[:, 0])
    valid_count = jnp.sum(valid.astype(jnp.float32))
    return (valid_count - sim_sum) / jnp.float32(B)


if __name__ == "__main__":
    num_classes = 16
    feat_dim = 32
    batch = 8

    key = jax.random.PRNGKey(0)
    k_centers, k_x, k_labels = jax.random.split(key, 3)

    # Deterministic "parameter" init, mirroring torch.randn(num_classes, feat_dim).
    centers = jax.random.normal(k_centers, (num_classes, feat_dim), dtype=jnp.float32)
    x = jax.random.normal(k_x, (batch, feat_dim), dtype=jnp.float32)
    labels = jax.random.randint(k_labels, (batch,), 0, num_classes, dtype=jnp.int32)

    loss = normalized_center_loss(x, centers, labels)
    jax.block_until_ready(loss)

    # Pure-JAX reference mirroring the PyTorch module.
    x_n = x / jnp.maximum(jnp.linalg.norm(x, axis=1, keepdims=True), 1e-12)
    c_n = centers / jnp.maximum(jnp.linalg.norm(centers, axis=1, keepdims=True), 1e-12)
    dist = 1.0 - x_n @ c_n.T
    mask = (labels[:, None] == jnp.arange(num_classes)[None, :]).astype(jnp.float32)
    ref = jnp.sum(dist * mask) / batch
    assert jnp.allclose(loss, ref, atol=1e-5), (loss, ref)

    print("KERNEL_OK")
</pallas_src>

<mosaic_0001>
module attributes {stable_mosaic.version = 11 : i64} {
  func.func @_center_loss_kernel(%arg0: i32, %arg1: memref<8x128xf32, #tpu.memory_space<vmem>>, %arg2: memref<8x128xf32, #tpu.memory_space<vmem>>, %arg3: memref<1x128xf32, #tpu.memory_space<vmem>>) attributes {dimension_semantics = [#tpu.dimension_semantics<parallel>], iteration_bounds = array<i64: 1>, scalar_prefetch = 0 : i64, scratch_operands = 0 : i64, tpu.core_type = #tpu.core_type<tc>, window_params = [{transform_indices = @transform_0, window_bounds = array<i64: 8, 128>}, {transform_indices = @transform_1, window_bounds = array<i64: 8, 128>}, {transform_indices = @transform_2, window_bounds = array<i64: 1, 128>}]} {
    %c0 = arith.constant 0 : index
    %c0_0 = arith.constant 0 : index
    %0 = vector.load %arg1[%c0, %c0_0] : memref<8x128xf32, #tpu.memory_space<vmem>>, vector<8x128xf32>
    %c0_1 = arith.constant 0 : index
    %c0_2 = arith.constant 0 : index
    %1 = vector.load %arg2[%c0_1, %c0_2] : memref<8x128xf32, #tpu.memory_space<vmem>>, vector<8x128xf32>
    %2 = arith.mulf %0, %1 : vector<8x128xf32>
    %cst = arith.constant dense<0.000000e+00> : vector<8xf32>
    %3 = vector.multi_reduction <add>, %2, %cst [1] : vector<8x128xf32> to vector<8xf32>
    %4 = vector.shape_cast %3 : vector<8xf32> to vector<8x1xf32>
    %5 = arith.mulf %0, %0 : vector<8x128xf32>
    %cst_3 = arith.constant dense<0.000000e+00> : vector<8xf32>
    %6 = vector.multi_reduction <add>, %5, %cst_3 [1] : vector<8x128xf32> to vector<8xf32>
    %7 = vector.shape_cast %6 : vector<8xf32> to vector<8x1xf32>
    %8 = arith.mulf %1, %1 : vector<8x128xf32>
    %cst_4 = arith.constant dense<0.000000e+00> : vector<8xf32>
    %9 = vector.multi_reduction <add>, %8, %cst_4 [1] : vector<8x128xf32> to vector<8xf32>
    %10 = vector.shape_cast %9 : vector<8xf32> to vector<8x1xf32>
    %cst_5 = arith.constant 1.000000e-24 : f32
    %11 = vector.broadcast %cst_5 : f32 to vector<8x1xf32>
    %12 = arith.maximumf %7, %11 : vector<8x1xf32>
    %13 = math.rsqrt %12 : vector<8x1xf32>
    %14 = arith.mulf %4, %13 : vector<8x1xf32>
    %cst_6 = arith.constant 1.000000e-24 : f32
    %15 = vector.broadcast %cst_6 : f32 to vector<8x1xf32>
    %16 = arith.maximumf %10, %15 : vector<8x1xf32>
    %17 = math.rsqrt %16 : vector<8x1xf32>
    %18 = arith.mulf %14, %17 : vector<8x1xf32>
    %19 = vector.shape_cast %18 : vector<8x1xf32> to vector<1x8x1xf32>
    %cst_7 = arith.constant dense<0.000000e+00> : vector<1xf32>
    %20 = vector.multi_reduction <add>, %19, %cst_7 [1, 2] : vector<1x8x1xf32> to vector<1xf32>
    %21 = vector.shape_cast %20 : vector<1xf32> to vector<1x1x1xf32>
    %22 = vector.extract %21[0, 0, 0] : f32 from vector<1x1x1xf32>
    %23 = vector.broadcast %22 : f32 to vector<1x128xf32>
    %c0_8 = arith.constant 0 : index
    %c0_9 = arith.constant 0 : index
    %24 = vector.load %arg3[%c0_8, %c0_9] : memref<1x128xf32, #tpu.memory_space<vmem>>, vector<1x128xf32>
    tpu.vector_store %arg3[%c0_8, %c0_9], %23 {strides = array<i32>} : memref<1x128xf32, #tpu.memory_space<vmem>>, vector<1x128xf32>,
    return
  }
  func.func @transform_0(%arg0: i32) -> (i32, i32) {
    %c0_i32 = arith.constant 0 : i32
    %c0_i32_0 = arith.constant 0 : i32
    return %arg0, %c0_i32 : i32, i32
  }
  func.func @transform_1(%arg0: i32) -> (i32, i32) {
    %c0_i32 = arith.constant 0 : i32
    %c0_i32_0 = arith.constant 0 : i32
    return %arg0, %c0_i32 : i32, i32
  }
  func.func @transform_2(%arg0: i32) -> (i32, i32) {
    %c0_i32 = arith.constant 0 : i32
    %c0_i32_0 = arith.constant 0 : i32
    return %arg0, %c0_i32 : i32, i32
  }
}

</mosaic_0001>

<llo_original>
// kernel: tpu_custom_call.1
$region0: #{tpu_custom_call.1}
  #allocation0 [shape = 'u32[]', space=smem, size = 0x4, offset = 0x4, fixed_abs, tag = 'smem constant byte address 0x4 - core index']
  #allocation1 [shape = 'u32[144,128]{1,0:T(1,128)}', space=vmem, size = 0x12000, scoped, tag = 'internal scratch']
  %s0 = inlined_call_operand.hbm [shape: f32[8,128], index: 0, kind: input, shape index: {}]
  %s1 = inlined_call_operand.hbm [shape: f32[8,128], index: 1, kind: input, shape index: {}]
  %s2 = inlined_call_operand.hbm [shape: f32[1,128], index: 2, kind: output, shape index: {}]
  %s3 = sld [smem:[#allocation0]]
  $region26: #{tpu_custom_call.1} parent=0
    _
  %s5 = ssub.s32 1, %s3
  %s6 = scalar_select 0, %s5, %s3
  $region1: #{tpu_custom_call.1} parent=0
    #allocation2 [shape = 'u8[4096]{0}', space=vmem, size = 0x1000, scoped, tag = 'input window, operand 0, single buffered']
    #allocation3 [shape = 's32[1]{0}', space=sflag, size = 0x4, scoped, tag = 'scoped memory for tpu_custom_call.1']
    #allocation4 [shape = 's32[1]{0}', space=sflag, size = 0x4, scoped, tag = 'scoped memory for tpu_custom_call.1']
    #allocation5 [shape = 'u8[4096]{0}', space=vmem, size = 0x1000, scoped, tag = 'input window, operand 1, single buffered']
    #allocation6 [shape = 's32[1]{0}', space=sflag, size = 0x4, scoped, tag = 'scoped memory for tpu_custom_call.1']
    #allocation7 [shape = 'u8[512]{0}', space=vmem, size = 0x400, scoped, tag = 'output window, operand 0, single buffered']
    %7 = vsyncpa [#allocation3], 0
    %8 = vsyncpa [#allocation6], 0
    %9 = vsyncpa [#allocation4], 0
    // Predicated region
    $region2: #{tpu_custom_call.1} parent=1 // pred_check
      _
    $region3: #{tpu_custom_call.1} parent=1 // pred_check_branch
      %11 = sbr.rel (0) target = $region5
    $region4: #{tpu_custom_call.1} parent=1 // pred_region
      %s13 = ssub.s32 128, 128
      %14 = vsyncadd [#allocation3], %s13
      %s16 = sshll.u32 [#allocation2], 4
      %s17 = int_to_ptr.vmem [resolvable:$true] %s16
      %19 = dma.hbm_to_vmem [thread:$0]  %s0, 128, %s17, [#allocation3]
    $region5: #{tpu_custom_call.1} parent=1 // pred_fallthru
      _
    // Predicated region
    $region6: #{tpu_custom_call.1} parent=1 // pred_check
      _
    $region7: #{tpu_custom_call.1} parent=1 // pred_check_branch
      %21 = sbr.rel (0) target = $region9
    $region8: #{tpu_custom_call.1} parent=1 // pred_region
      %s23 = ssub.s32 128, 128
      %24 = vsyncadd [#allocation6], %s23
      %s26 = sshll.u32 [#allocation5], 4
      %s27 = int_to_ptr.vmem [resolvable:$true] %s26
      %29 = dma.hbm_to_vmem [thread:$0]  %s1, 128, %s27, [#allocation6]
    $region9: #{tpu_custom_call.1} parent=1 // pred_fallthru
      _
    // Predicated region
    $region10: #{tpu_custom_call.1} parent=1 // pred_check
      _
    $region11: #{tpu_custom_call.1} parent=1 // pred_check_branch
      %31 = sbr.rel (0) target = $region13
    $region12: #{tpu_custom_call.1} parent=1 // pred_region
      %32 = dma.done [#allocation3], 128
    $region13: #{tpu_custom_call.1} parent=1 // pred_fallthru
      _
    // Predicated region
    $region14: #{tpu_custom_call.1} parent=1 // pred_check
      _
    $region15: #{tpu_custom_call.1} parent=1 // pred_check_branch
      %34 = sbr.rel (0) target = $region17
    $region16: #{tpu_custom_call.1} parent=1 // pred_region
      %35 = dma.done [#allocation6], 128
    $region17: #{tpu_custom_call.1} parent=1 // pred_fallthru
      _
    %v36 = vld [vmem:[#allocation2] sm:$0xff]
    %v37 = vld [vmem:[#allocation5] sm:$0xff]
    %v38 = vmul.f32 %v36, %v37
    %39 = vadd.xlane.f32.xlu0 %v38
    %v40 = vpop.xlane.xlu0 %39
    %v41 = vmul.f32 %v36, %v36
    %42 = vadd.xlane.f32.xlu0 %v41
    %v43 = vpop.xlane.xlu0 %42
    %v44 = vmul.f32 %v37, %v37
    %45 = vadd.xlane.f32.xlu0 %v44
    %v46 = vpop.xlane.xlu0 %45
    %v47 = vmax.f32 %v43, 1e-24
    %v48 = vrsqrt.pop %v47
    %v49 = vmul.f32 %v40, %v48
    %v50 = vmax.f32 %v46, 1e-24
    %v51 = vrsqrt.pop %v50
    %v52 = vmul.f32 %v49, %v51
    %vm53 = vcmask 7168
    %v54 = vsel %vm53, %v52, 0.0
    %55 = vadd.xlane.f32.xlu0 %v54
    %v56 = vpop.xlane.xlu0 %55
    %v57 = vrot.slane %v56, 4
    %v58 = vadd.f32 %v56, %v57
    %v59 = vrot.slane %v58, 2
    %v60 = vadd.f32 %v58, %v59
    %v61 = vrot.slane %v60, 1
    %v62 = vadd.f32 %v60, %v61
    %s63 = vtos %v62
    %v64 = vstv %s63
    %65 = vst [vmem:[#allocation7] sm:$0x1] %v64
    // Predicated region
    $region18: #{tpu_custom_call.1} parent=1 // pred_check
      _
    $region19: #{tpu_custom_call.1} parent=1 // pred_check_branch
      %67 = sbr.rel (0) target = $region21
    $region20: #{tpu_custom_call.1} parent=1 // pred_region
      %s69 = ssub.s32 16, 16
      %70 = vsyncadd [#allocation4], %s69
      %s72 = sshll.u32 [#allocation7], 4
      %s73 = int_to_ptr.vmem [resolvable:$true] %s72
      %75 = dma.vmem_to_hbm [thread:$0]  %s73, 16, %s2, [#allocation4]
    $region21: #{tpu_custom_call.1} parent=1 // pred_fallthru
      _
    // Predicated region
    $region22: #{tpu_custom_call.1} parent=1 // pred_check
      _
    $region23: #{tpu_custom_call.1} parent=1 // pred_check_branch
      %77 = sbr.rel (0) target = $region25
    $region24: #{tpu_custom_call.1} parent=1 // pred_region
      %78 = dma.done [#allocation4], 16
    $region25: #{tpu_custom_call.1} parent=1 // pred_fallthru
      _
    %79 = vsyncpa [#allocation3], 1
    %80 = vsyncpa [#allocation6], 1
    %81 = vsyncpa [#allocation4], 1

</llo_original>
